<compile_context>
chip_gen: v7x
topology: tpu7x:2x2x1
jax: 0.10.0
libtpu: 0.0.40
codegen_flags: <defaults>
</compile_context>

<pallas_src>
import jax
import jax.numpy as jnp
from jax.experimental import pallas as pl
from jax.experimental.pallas import tpu as pltpu

_LANE = 128
_TARGET_BLOCK_BYTES = 2 * 1024 * 1024  # ~2 MiB per buffer: safe for v7x 64 MiB VMEM

_COMPILER_PARAMS = pltpu.CompilerParams(
    dimension_semantics=("parallel",),   # shard the row grid across v7x's 2 TCs
    vmem_limit_bytes=32 * 1024 * 1024,   # explicit scoped-VMEM budget (<= v7x physical)
)


def _pick_width(total):
    """Widest lane-dense last dim (multiple of 128) that divides `total`."""
    for w in (1024, 512, 256, 128):
        if total % w == 0:
            return w
    return _LANE


def _lane_dense_view(x):
    """(rows, W) lane-dense 2-D view of x.

    Pure reshape (bitcast on a contiguous array) when x.size is a multiple of
    128; zero-pads only in the rare indivisible case.
    """
    total = x.size
    w = _pick_width(total)
    flat = x.reshape(-1)
    if total % w:                       # only hit when total % 128 != 0
        flat = jnp.pad(flat, (0, (-total) % w))
    return flat.reshape(-1, w), total


def _from_lane_dense(x2, total, shape):
    flat = x2.reshape(-1)
    if flat.size != total:
        flat = flat[:total]
    return flat.reshape(shape)


def _pick_block_rows(rows, width, itemsize):
    """Row-block size: whole array if small, else ~2 MiB tiles (multiple of 8)."""
    cap = max(8, (_TARGET_BLOCK_BYTES // (width * itemsize)) // 8 * 8)
    return rows if rows <= cap else cap


# ---------------------------------------------------------------------------
# forward(): identity placeholder for the abstract forward pass.
# ---------------------------------------------------------------------------
def _forward_kernel(x_ref, o_ref):
    o_ref[...] = x_ref[...]


def distributed_model_forward(x):
    """Pallas-backed forward pass (identity placeholder, tiled & lane-dense)."""
    x2, total = _lane_dense_view(x)
    rows, w = x2.shape
    br = _pick_block_rows(rows, w, x2.dtype.itemsize)
    grid_rows = (rows + br - 1) // br

    y2 = pl.pallas_call(
        _forward_kernel,
        out_shape=jax.ShapeDtypeStruct(x2.shape, x2.dtype),
        grid=(grid_rows,),
        in_specs=[pl.BlockSpec((br, w), lambda i: (i, 0))],
        out_specs=pl.BlockSpec((br, w), lambda i: (i, 0)),
        compiler_params=_COMPILER_PARAMS,
    )(x2)

    return _from_lane_dense(y2, total, x.shape)


# ---------------------------------------------------------------------------
# test_forward(): forward pass + MSE "test loss".
# The kernel only computes per-block sum-of-squared-errors partials; the
# identity y_est is returned as x itself (no redundant HBM write-back).
# ---------------------------------------------------------------------------
def _make_sse_kernel(rows, block_rows):
    needs_mask = (rows % block_rows) != 0   # trace-time flag for a ragged last block

    def kernel(x_ref, y_ref, sse_ref):
        d = x_ref[...].astype(jnp.float32) - y_ref[...].astype(jnp.float32)
        if needs_mask:
            row0 = pl.program_id(0) * block_rows
            row_ids = row0 + jax.lax.broadcasted_iota(jnp.int32, d.shape, 0)
            d = jnp.where(row_ids < rows, d, 0.0)
        sse_ref[0] = jnp.sum(d * d)   # scalar partial -> SMEM (no masked vector store)

    return kernel


def distributed_model_test_forward(x, y):
    """test_forward: identity forward + mean-squared-error test loss."""
    assert x.shape == y.shape
    x2, total = _lane_dense_view(x)
    y2, _ = _lane_dense_view(y)      # identical padding (if any) => diff is 0 there
    rows, w = x2.shape
    br = _pick_block_rows(rows, w, max(x2.dtype.itemsize, 4))
    grid_rows = (rows + br - 1) // br

    # NOTE: pipeline_mode=pl.Buffered(3) on the two inputs is a possible further
    # win once grid_rows >> 1 (purely mem-bound kernel); default depth-2 kept here.
    partials = pl.pallas_call(
        _make_sse_kernel(rows, br),
        out_shape=jax.ShapeDtypeStruct((grid_rows,), jnp.float32),
        grid=(grid_rows,),
        in_specs=[
            pl.BlockSpec((br, w), lambda i: (i, 0)),
            pl.BlockSpec((br, w), lambda i: (i, 0)),
        ],
        out_specs=pl.BlockSpec((1,), lambda i: (i,),
                               memory_space=pltpu.MemorySpace.SMEM),
        compiler_params=_COMPILER_PARAMS,
    )(x2, y2)

    loss = jnp.sum(partials) / jnp.float32(total)   # mean over real elements
    # Identity placeholder forward: y_est is x itself (no extra HBM pass).
    return x, loss


# TODO(synk): forward_backward() (autograd update) and join() (process join)
#             have no Pallas-kernel equivalent for an abstract module.


if __name__ == "__main__":
    key = jax.random.PRNGKey(0)
    kx, ky = jax.random.split(key)

    # Small NCHW feature tensor consistent with the generic module interface.
    x = jax.random.normal(kx, (2, 4, 16, 16), dtype=jnp.float32)
    y = jax.random.normal(ky, (2, 4, 16, 16), dtype=jnp.float32)

    y_est = jax.block_until_ready(distributed_model_forward(x))
    assert y_est.shape == x.shape and y_est.dtype == x.dtype
    assert bool(jnp.allclose(y_est, x))

    y_est2, loss = distributed_model_test_forward(x, y)
    jax.block_until_ready(loss)
    ref_loss = jnp.mean((x - y).astype(jnp.float32) ** 2)
    assert bool(jnp.allclose(y_est2, x))
    assert bool(jnp.allclose(loss, ref_loss, rtol=1e-5, atol=1e-6))

    print("KERNEL_OK")
</pallas_src>

<mosaic_0001>
module attributes {stable_mosaic.version = 11 : i64} {
  func.func @_forward_kernel(%arg0: i32, %arg1: memref<2x1024xf32, #tpu.memory_space<vmem>>, %arg2: memref<2x1024xf32, #tpu.memory_space<vmem>>) attributes {dimension_semantics = [#tpu.dimension_semantics<parallel>], iteration_bounds = array<i64: 1>, scalar_prefetch = 0 : i64, scratch_operands = 0 : i64, tpu.core_type = #tpu.core_type<tc>, window_params = [{transform_indices = @transform_0, window_bounds = array<i64: 2, 1024>}, {transform_indices = @transform_1, window_bounds = array<i64: 2, 1024>}]} {
    %c0 = arith.constant 0 : index
    %c0_0 = arith.constant 0 : index
    %0 = vector.load %arg1[%c0, %c0_0] : memref<2x1024xf32, #tpu.memory_space<vmem>>, vector<2x1024xf32>
    %c0_1 = arith.constant 0 : index
    %c0_2 = arith.constant 0 : index
    %1 = vector.load %arg2[%c0_1, %c0_2] : memref<2x1024xf32, #tpu.memory_space<vmem>>, vector<2x1024xf32>
    tpu.vector_store %arg2[%c0_1, %c0_2], %0 {strides = array<i32>} : memref<2x1024xf32, #tpu.memory_space<vmem>>, vector<2x1024xf32>,
    return
  }
  func.func @transform_0(%arg0: i32) -> (i32, i32) {
    %c0_i32 = arith.constant 0 : i32
    %c0_i32_0 = arith.constant 0 : i32
    return %arg0, %c0_i32 : i32, i32
  }
  func.func @transform_1(%arg0: i32) -> (i32, i32) {
    %c0_i32 = arith.constant 0 : i32
    %c0_i32_0 = arith.constant 0 : i32
    return %arg0, %c0_i32 : i32, i32
  }
}

</mosaic_0001>

<llo_original>
// kernel: tpu_custom_call.1
$region0: #{tpu_custom_call.1}
  #allocation0 [shape = 'u32[]', space=smem, size = 0x4, offset = 0x4, fixed_abs, tag = 'smem constant byte address 0x4 - core index']
  #allocation1 [shape = 'u32[144,128]{1,0:T(1,128)}', space=vmem, size = 0x12000, scoped, tag = 'internal scratch']
  %s0 = inlined_call_operand.hbm [shape: f32[2,1024], index: 0, kind: input, shape index: {}]
  %s1 = inlined_call_operand.hbm [shape: f32[2,1024], index: 1, kind: output, shape index: {}]
  %s2 = sld [smem:[#allocation0]]
  $region18: #{tpu_custom_call.1} parent=0
    _
  %s4 = ssub.s32 1, %s2
  %s5 = scalar_select 0, %s4, %s2
  $region1: #{tpu_custom_call.1} parent=0
    #allocation2 [shape = 'u8[8192]{0}', space=vmem, size = 0x2000, scoped, tag = 'input window, operand 0, single buffered']
    #allocation3 [shape = 's32[1]{0}', space=sflag, size = 0x4, scoped, tag = 'scoped memory for tpu_custom_call.1']
    #allocation4 [shape = 's32[1]{0}', space=sflag, size = 0x4, scoped, tag = 'scoped memory for tpu_custom_call.1']
    #allocation5 [shape = 'u8[8192]{0}', space=vmem, size = 0x2000, scoped, tag = 'output window, operand 0, single buffered']
    %6 = vsyncpa [#allocation3], 0
    %7 = vsyncpa [#allocation4], 0
    // Predicated region
    $region2: #{tpu_custom_call.1} parent=1 // pred_check
      _
    $region3: #{tpu_custom_call.1} parent=1 // pred_check_branch
      %9 = sbr.rel (0) target = $region5
    $region4: #{tpu_custom_call.1} parent=1 // pred_region
      %s11 = ssub.s32 256, 256
      %12 = vsyncadd [#allocation3], %s11
      %s14 = sshll.u32 [#allocation2], 4
      %s15 = int_to_ptr.vmem [resolvable:$true] %s14
      %17 = dma.hbm_to_vmem [thread:$0]  %s0, 256, %s15, [#allocation3]
    $region5: #{tpu_custom_call.1} parent=1 // pred_fallthru
      _
    // Predicated region
    $region6: #{tpu_custom_call.1} parent=1 // pred_check
      _
    $region7: #{tpu_custom_call.1} parent=1 // pred_check_branch
      %19 = sbr.rel (0) target = $region9
    $region8: #{tpu_custom_call.1} parent=1 // pred_region
      %20 = dma.done [#allocation3], 256
    $region9: #{tpu_custom_call.1} parent=1 // pred_fallthru
      _
    %v21 = vld [vmem:[#allocation2] sm:$0xff]
    %v22 = vld [vmem:[#allocation2 + $0x8] sm:$0xff]
    %23 = vst [vmem:[#allocation5] sm:$0xff] %v21
    %24 = vst [vmem:[#allocation5 + $0x8] sm:$0xff] %v22
    // Predicated region
    $region10: #{tpu_custom_call.1} parent=1 // pred_check
      _
    $region11: #{tpu_custom_call.1} parent=1 // pred_check_branch
      %26 = sbr.rel (0) target = $region13
    $region12: #{tpu_custom_call.1} parent=1 // pred_region
      %s28 = ssub.s32 256, 256
      %29 = vsyncadd [#allocation4], %s28
      %s31 = sshll.u32 [#allocation5], 4
      %s32 = int_to_ptr.vmem [resolvable:$true] %s31
      %34 = dma.vmem_to_hbm [thread:$0]  %s32, 256, %s1, [#allocation4]
    $region13: #{tpu_custom_call.1} parent=1 // pred_fallthru
      _
    // Predicated region
    $region14: #{tpu_custom_call.1} parent=1 // pred_check
      _
    $region15: #{tpu_custom_call.1} parent=1 // pred_check_branch
      %36 = sbr.rel (0) target = $region17
    $region16: #{tpu_custom_call.1} parent=1 // pred_region
      %37 = dma.done [#allocation4], 256
    $region17: #{tpu_custom_call.1} parent=1 // pred_fallthru
      _
    %38 = vsyncpa [#allocation3], 1
    %39 = vsyncpa [#allocation4], 1

</llo_original>
